<compile_context>
chip_gen: v6e
topology: v6e:2x2x1
jax: 0.10.0
libtpu: 0.0.40
codegen_flags: <defaults>
</compile_context>

<pallas_src>
import numpy as np
import jax
import jax.numpy as jnp
from jax import lax
from jax.experimental import pallas as pl
from jax.experimental.pallas import tpu as pltpu

START_INDEX = 104   # synthetic id for '[concept_start]'
END_INDEX = 105     # synthetic id for '[concept_end]'
MAX_SPAN = 64       # maximum span-1 length compared (concept mentions are short)


def _rel_kernel(meta_ref, sent_ref, out_ref):
    # meta_ref: (4, B) int32 in SMEM -> [start1, start2, type1, type2]
    # sent_ref: (1, 1, S_pad) int32 VMEM block (one padded sentence row)
    # out_ref : (1, 1, 1) float32 "related" flag
    b = pl.program_id(0)
    start1 = meta_ref[0, b]
    start2 = meta_ref[1, b]
    same_type = meta_ref[2, b] == meta_ref[3, b]

    row = sent_ref[0]                                    # (1, S_pad) int32
    S_pad = row.shape[-1]
    K = MAX_SPAN

    lane = lax.broadcasted_iota(jnp.int32, (1, S_pad), 1)
    is_end = row == END_INDEX

    # First [concept_end] strictly after each span start (END padding guarantees one).
    fe1 = jnp.min(jnp.where(is_end & (lane > start1), lane, S_pad),
                  axis=1, keepdims=True)                 # (1, 1)
    fe2 = jnp.min(jnp.where(is_end & (lane > start2), lane, S_pad),
                  axis=1, keepdims=True)                 # (1, 1)
    m1 = (lane > start1) & (lane < fe1)                  # (1, S_pad) span-1 positions
    m2 = (lane > start2) & (lane < fe2)                  # (1, S_pad) span-2 positions

    # Gather the first K tokens of span 1 into a (K, 1) window (one-hot + lane sum).
    pos = lax.broadcasted_iota(jnp.int32, (K, S_pad), 1)
    off = lax.broadcasted_iota(jnp.int32, (K, S_pad), 0)
    sel1 = pos == (start1 + 1 + off)                     # (K, S_pad) one-hot rows
    w1 = jnp.sum(jnp.where(sel1, row, 0), axis=1, keepdims=True)   # (K, 1) int32
    v1 = jnp.any(sel1 & m1, axis=1, keepdims=True)       # (K, 1) valid span-1 slot

    # Token overlap: span-1 window tokens vs span-2 positions (bool, no f32 casts).
    match = (w1 == row) & v1 & m2                        # (K, S_pad) bool
    in2 = jnp.any(match, axis=1, keepdims=True)          # (K, 1): span-1 tok found in span 2
    in1 = jnp.any(match, axis=0, keepdims=True)          # (1, S_pad): span-2 tok found in span 1

    c1 = jnp.sum(in2.astype(jnp.int32), axis=0, keepdims=True)     # (1, 1)
    c2 = jnp.sum(in1.astype(jnp.int32), axis=1, keepdims=True)     # (1, 1)
    len1 = jnp.sum(v1.astype(jnp.int32), axis=0, keepdims=True)    # (1, 1)
    len2 = jnp.sum(m2.astype(jnp.int32), axis=1, keepdims=True)    # (1, 1)

    count = c1 + c2
    denom = len1 + len2
    # Exact integer threshold: score > 0.6  <=>  5*count > 3*denom (false when denom == 0).
    related = jnp.logical_and(same_type, 5 * count > 3 * denom)    # (1, 1) bool
    out_ref[0] = related.astype(jnp.float32)


def rel_relation_classifier(sent, span_start1, type1, span_start2, type2):
    """sent: (B, S) int token ids; span_start*/type*: (B,). Returns (B, 2) f32."""
    B, S = sent.shape
    K = MAX_SPAN
    S_pad = ((S + K + 127) // 128) * 128
    # Pad with END_INDEX so spans reaching the end of the sentence terminate and
    # the K-wide gather window never reads garbage.
    sent_p = jnp.pad(sent.astype(jnp.int32), ((0, 0), (0, S_pad - S)),
                     constant_values=END_INDEX).reshape(B, 1, S_pad)
    meta = jnp.stack([
        jnp.asarray(span_start1, jnp.int32).reshape(B),
        jnp.asarray(span_start2, jnp.int32).reshape(B),
        jnp.asarray(type1, jnp.int32).reshape(B),
        jnp.asarray(type2, jnp.int32).reshape(B),
    ], axis=0)                                           # (4, B): long axis last for SMEM

    flags = pl.pallas_call(
        _rel_kernel,
        out_shape=jax.ShapeDtypeStruct((B, 1, 1), jnp.float32),
        grid_spec=pltpu.PrefetchScalarGridSpec(
            num_scalar_prefetch=1,
            grid=(B,),
            in_specs=[pl.BlockSpec((1, 1, S_pad), lambda b, m: (b, 0, 0))],
            out_specs=pl.BlockSpec((1, 1, 1), lambda b, m: (b, 0, 0)),
        ),
        compiler_params=pltpu.CompilerParams(
            dimension_semantics=("parallel",)),
    )(meta, sent_p)

    flags = flags.reshape(B, 1)
    return jnp.concatenate([1.0 - flags, flags], axis=1)   # columns [not-related, related]


def _reference(sent, span_start1, type1, span_start2, type2):
    sent = np.asarray(sent)
    B, S = sent.shape
    out = np.zeros((B, 2), np.float32)
    for b in range(B):
        if int(type1[b]) != int(type2[b]):
            out[b] = [1.0, 0.0]
            continue

        def span(st):
            toks = []
            for x in sent[b, st + 1:]:
                if int(x) == END_INDEX:
                    break
                toks.append(int(x))
            return toks

        t1 = span(int(span_start1[b]))
        t2 = span(int(span_start2[b]))
        c1 = sum(1 for x in t1 if x in t2)
        c2 = sum(1 for x in t2 if x in t1)
        denom = len(t1) + len(t2)
        score = (c1 + c2) / denom if denom > 0 else 0.0
        out[b] = [0.0, 1.0] if score > 0.6 else [1.0, 0.0]
    return out


if __name__ == "__main__":
    B, S = 4, 128
    key = jax.random.PRNGKey(0)
    sent = np.array(
        jax.random.randint(key, (B, S), 1000, 2000, dtype=jnp.int32))

    span_start1 = np.array([5, 10, 3, 7], np.int32)
    span_start2 = np.array([20, 30, 40, 50], np.int32)
    type1 = np.array([1, 2, 1, 1], np.int32)
    type2 = np.array([1, 2, 2, 1], np.int32)

    span1_toks = [[1500, 1501, 1502], [1600, 1601],
                  [1700, 1701], [1800, 1801, 1802, 1803]]
    span2_toks = [[1500, 1501, 1502], [1610, 1611],
                  [1700, 1701], [1800, 1999, 1998, 1997]]
    for b in range(B):
        st1, st2 = int(span_start1[b]), int(span_start2[b])
        sent[b, st1] = START_INDEX
        sent[b, st1 + 1: st1 + 1 + len(span1_toks[b])] = span1_toks[b]
        sent[b, st1 + 1 + len(span1_toks[b])] = END_INDEX
        sent[b, st2] = START_INDEX
        sent[b, st2 + 1: st2 + 1 + len(span2_toks[b])] = span2_toks[b]
        sent[b, st2 + 1 + len(span2_toks[b])] = END_INDEX

    out = rel_relation_classifier(
        jnp.asarray(sent), jnp.asarray(span_start1), jnp.asarray(type1),
        jnp.asarray(span_start2), jnp.asarray(type2))
    out = jax.block_until_ready(out)

    ref = _reference(sent, span_start1, type1, span_start2, type2)
    np.testing.assert_allclose(np.asarray(out), ref, atol=0, rtol=0)
    print("KERNEL_OK")
</pallas_src>

<mosaic_0001>
module attributes {stable_mosaic.version = 11 : i64} {
  func.func @_rel_kernel(%arg0: i32, %arg1: memref<4x4xi32, #tpu.memory_space<smem>>, %arg2: memref<1x1x256xi32, #tpu.memory_space<vmem>>, %arg3: memref<1x1x1xf32, #tpu.memory_space<vmem>>) attributes {dimension_semantics = [#tpu.dimension_semantics<parallel>], iteration_bounds = array<i64: 4>, scalar_prefetch = 1 : i64, scratch_operands = 0 : i64, tpu.core_type = #tpu.core_type<tc>, window_params = [{transform_indices = @transform_0, window_bounds = array<i64: 1, 1, 256>}, {transform_indices = @transform_1, window_bounds = array<i64: 1, 1, 1>}]} {
    %c0 = arith.constant 0 : index
    %0 = arith.index_cast %arg0 : i32 to index
    %1 = memref.load %arg1[%c0, %0] : memref<4x4xi32, #tpu.memory_space<smem>>
    %c1 = arith.constant 1 : index
    %2 = arith.index_cast %arg0 : i32 to index
    %3 = memref.load %arg1[%c1, %2] : memref<4x4xi32, #tpu.memory_space<smem>>
    %c2 = arith.constant 2 : index
    %4 = arith.index_cast %arg0 : i32 to index
    %5 = memref.load %arg1[%c2, %4] : memref<4x4xi32, #tpu.memory_space<smem>>
    %c3 = arith.constant 3 : index
    %6 = arith.index_cast %arg0 : i32 to index
    %7 = memref.load %arg1[%c3, %6] : memref<4x4xi32, #tpu.memory_space<smem>>
    %8 = arith.cmpi eq, %5, %7 : i32
    %c0_0 = arith.constant 0 : index
    %c0_1 = arith.constant 0 : index
    %c0_2 = arith.constant 0 : index
    %9 = vector.load %arg2[%c0_0, %c0_1, %c0_2] : memref<1x1x256xi32, #tpu.memory_space<vmem>>, vector<1x1x256xi32>
    %10 = vector.shape_cast %9 : vector<1x1x256xi32> to vector<1x256xi32>
    %11 = tpu.iota {dimensions = array<i32: 1>} : vector<1x256xi32>
    %c105_i32 = arith.constant 105 : i32
    %12 = vector.broadcast %c105_i32 : i32 to vector<1x256xi32>
    %13 = arith.cmpi eq, %10, %12 : vector<1x256xi32>
    %14 = vector.broadcast %1 : i32 to vector<1x256xi32>
    %15 = arith.cmpi sgt, %11, %14 : vector<1x256xi32>
    %16 = arith.andi %13, %15 : vector<1x256xi1>
    %c256_i32 = arith.constant 256 : i32
    %17 = vector.broadcast %c256_i32 : i32 to vector<1x256xi32>
    %18 = arith.select %16, %11, %17 : vector<1x256xi1>, vector<1x256xi32>
    %cst = arith.constant dense<2147483647> : vector<1xi32>
    %19 = vector.multi_reduction <minsi>, %18, %cst [1] : vector<1x256xi32> to vector<1xi32>
    %20 = vector.shape_cast %19 : vector<1xi32> to vector<1x1xi32>
    %21 = vector.broadcast %3 : i32 to vector<1x256xi32>
    %22 = arith.cmpi sgt, %11, %21 : vector<1x256xi32>
    %23 = arith.andi %13, %22 : vector<1x256xi1>
    %c256_i32_3 = arith.constant 256 : i32
    %24 = vector.broadcast %c256_i32_3 : i32 to vector<1x256xi32>
    %25 = arith.select %23, %11, %24 : vector<1x256xi1>, vector<1x256xi32>
    %cst_4 = arith.constant dense<2147483647> : vector<1xi32>
    %26 = vector.multi_reduction <minsi>, %25, %cst_4 [1] : vector<1x256xi32> to vector<1xi32>
    %27 = vector.shape_cast %26 : vector<1xi32> to vector<1x1xi32>
    %28 = vector.broadcast %1 : i32 to vector<1x256xi32>
    %29 = arith.cmpi sgt, %11, %28 : vector<1x256xi32>
    %30 = vector.broadcast %20 : vector<1x1xi32> to vector<1x256xi32>
    %31 = arith.cmpi slt, %11, %30 : vector<1x256xi32>
    %32 = arith.andi %29, %31 : vector<1x256xi1>
    %33 = vector.broadcast %3 : i32 to vector<1x256xi32>
    %34 = arith.cmpi sgt, %11, %33 : vector<1x256xi32>
    %35 = vector.broadcast %27 : vector<1x1xi32> to vector<1x256xi32>
    %36 = arith.cmpi slt, %11, %35 : vector<1x256xi32>
    %37 = arith.andi %34, %36 : vector<1x256xi1>
    %38 = tpu.iota {dimensions = array<i32: 1>} : vector<64x256xi32>
    %39 = tpu.iota {dimensions = array<i32: 0>} : vector<64x256xi32>
    %c1_i32 = arith.constant 1 : i32
    %40 = arith.addi %1, %c1_i32 : i32
    %41 = vector.broadcast %40 : i32 to vector<64x256xi32>
    %42 = arith.addi %41, %39 : vector<64x256xi32>
    %43 = arith.cmpi eq, %38, %42 : vector<64x256xi32>
    %c0_i32 = arith.constant 0 : i32
    %44 = vector.shape_cast %10 : vector<1x256xi32> to vector<1x256xi32>
    %45 = vector.broadcast %44 : vector<1x256xi32> to vector<64x256xi32>
    %46 = vector.broadcast %c0_i32 : i32 to vector<64x256xi32>
    %47 = arith.select %43, %45, %46 : vector<64x256xi1>, vector<64x256xi32>
    %cst_5 = arith.constant dense<0> : vector<64xi32>
    %48 = vector.multi_reduction <add>, %47, %cst_5 [1] : vector<64x256xi32> to vector<64xi32>
    %49 = vector.shape_cast %48 : vector<64xi32> to vector<64x1xi32>
    %50 = vector.broadcast %32 : vector<1x256xi1> to vector<64x256xi1>
    %51 = arith.andi %43, %50 : vector<64x256xi1>
    %cst_6 = arith.constant 1.000000e+00 : f32
    %cst_7 = arith.constant 0.000000e+00 : f32
    %52 = vector.broadcast %cst_6 : f32 to vector<64x256xf32>
    %53 = vector.broadcast %cst_7 : f32 to vector<64x256xf32>
    %54 = arith.select %51, %52, %53 : vector<64x256xi1>, vector<64x256xf32>
    %cst_8 = arith.constant dense<0xFF800000> : vector<64xf32>
    %55 = vector.multi_reduction <maximumf>, %54, %cst_8 [1] : vector<64x256xf32> to vector<64xf32>
    %cst_9 = arith.constant 0.000000e+00 : f32
    %56 = vector.broadcast %cst_9 : f32 to vector<64xf32>
    %57 = arith.cmpf ogt, %55, %56 : vector<64xf32>
    %58 = vector.shape_cast %57 : vector<64xi1> to vector<64x1xi1>
    %59 = vector.broadcast %49 : vector<64x1xi32> to vector<64x256xi32>
    %60 = vector.broadcast %10 : vector<1x256xi32> to vector<64x256xi32>
    %61 = arith.cmpi eq, %59, %60 : vector<64x256xi32>
    %62 = vector.broadcast %58 : vector<64x1xi1> to vector<64x256xi1>
    %63 = arith.andi %61, %62 : vector<64x256xi1>
    %64 = vector.broadcast %37 : vector<1x256xi1> to vector<64x256xi1>
    %65 = arith.andi %63, %64 : vector<64x256xi1>
    %cst_10 = arith.constant 1.000000e+00 : f32
    %cst_11 = arith.constant 0.000000e+00 : f32
    %66 = vector.broadcast %cst_10 : f32 to vector<64x256xf32>
    %67 = vector.broadcast %cst_11 : f32 to vector<64x256xf32>
    %68 = arith.select %65, %66, %67 : vector<64x256xi1>, vector<64x256xf32>
    %cst_12 = arith.constant dense<0xFF800000> : vector<64xf32>
    %69 = vector.multi_reduction <maximumf>, %68, %cst_12 [1] : vector<64x256xf32> to vector<64xf32>
    %cst_13 = arith.constant 0.000000e+00 : f32
    %70 = vector.broadcast %cst_13 : f32 to vector<64xf32>
    %71 = arith.cmpf ogt, %69, %70 : vector<64xf32>
    %72 = vector.shape_cast %71 : vector<64xi1> to vector<64x1xi1>
    %cst_14 = arith.constant 1.000000e+00 : f32
    %cst_15 = arith.constant 0.000000e+00 : f32
    %73 = vector.broadcast %cst_14 : f32 to vector<64x256xf32>
    %74 = vector.broadcast %cst_15 : f32 to vector<64x256xf32>
    %75 = arith.select %65, %73, %74 : vector<64x256xi1>, vector<64x256xf32>
    %cst_16 = arith.constant dense<0xFF800000> : vector<256xf32>
    %76 = vector.multi_reduction <maximumf>, %75, %cst_16 [0] : vector<64x256xf32> to vector<256xf32>
    %cst_17 = arith.constant 0.000000e+00 : f32
    %77 = vector.broadcast %cst_17 : f32 to vector<256xf32>
    %78 = arith.cmpf ogt, %76, %77 : vector<256xf32>
    %79 = vector.shape_cast %78 : vector<256xi1> to vector<1x256xi1>
    %80 = arith.extui %72 : vector<64x1xi1> to vector<64x1xi32>
    %cst_18 = arith.constant dense<0> : vector<1xi32>
    %81 = vector.multi_reduction <add>, %80, %cst_18 [0] : vector<64x1xi32> to vector<1xi32>
    %82 = vector.shape_cast %81 : vector<1xi32> to vector<1x1xi32>
    %83 = arith.extui %79 : vector<1x256xi1> to vector<1x256xi32>
    %cst_19 = arith.constant dense<0> : vector<1xi32>
    %84 = vector.multi_reduction <add>, %83, %cst_19 [1] : vector<1x256xi32> to vector<1xi32>
    %85 = vector.shape_cast %84 : vector<1xi32> to vector<1x1xi32>
    %86 = arith.extui %58 : vector<64x1xi1> to vector<64x1xi32>
    %cst_20 = arith.constant dense<0> : vector<1xi32>
    %87 = vector.multi_reduction <add>, %86, %cst_20 [0] : vector<64x1xi32> to vector<1xi32>
    %88 = vector.shape_cast %87 : vector<1xi32> to vector<1x1xi32>
    %89 = arith.extui %37 : vector<1x256xi1> to vector<1x256xi32>
    %cst_21 = arith.constant dense<0> : vector<1xi32>
    %90 = vector.multi_reduction <add>, %89, %cst_21 [1] : vector<1x256xi32> to vector<1xi32>
    %91 = vector.shape_cast %90 : vector<1xi32> to vector<1x1xi32>
    %92 = arith.addi %82, %85 : vector<1x1xi32>
    %93 = arith.addi %88, %91 : vector<1x1xi32>
    %c5_i32 = arith.constant 5 : i32
    %94 = vector.broadcast %c5_i32 : i32 to vector<1x1xi32>
    %95 = arith.muli %94, %92 : vector<1x1xi32>
    %c3_i32 = arith.constant 3 : i32
    %96 = vector.broadcast %c3_i32 : i32 to vector<1x1xi32>
    %97 = arith.muli %96, %93 : vector<1x1xi32>
    %98 = arith.cmpi sgt, %95, %97 : vector<1x1xi32>
    %99 = vector.broadcast %8 : i1 to vector<1x1xi1>
    %100 = arith.andi %99, %98 : vector<1x1xi1>
    %101 = arith.extui %100 : vector<1x1xi1> to vector<1x1xi32>
    %102 = arith.sitofp %101 : vector<1x1xi32> to vector<1x1xf32>
    %c0_22 = arith.constant 0 : index
    %c0_23 = arith.constant 0 : index
    %c0_24 = arith.constant 0 : index
    %103 = vector.load %arg3[%c0_22, %c0_23, %c0_24] : memref<1x1x1xf32, #tpu.memory_space<vmem>>, vector<1x1x1xf32>
    %104 = vector.shape_cast %103 : vector<1x1x1xf32> to vector<1x1xf32>
    %105 = vector.shape_cast %102 : vector<1x1xf32> to vector<1x1x1xf32>
    tpu.vector_store %arg3[%c0_22, %c0_23, %c0_24], %105 {strides = array<i32>} : memref<1x1x1xf32, #tpu.memory_space<vmem>>, vector<1x1x1xf32>,
    return
  }
  func.func @transform_0(%arg0: i32, %arg1: memref<4x4xi32, #tpu.memory_space<smem>>) -> (i32, i32, i32) {
    %c0_i32 = arith.constant 0 : i32
    %c0_i32_0 = arith.constant 0 : i32
    %c0_i32_1 = arith.constant 0 : i32
    return %arg0, %c0_i32, %c0_i32_0 : i32, i32, i32
  }
  func.func @transform_1(%arg0: i32, %arg1: memref<4x4xi32, #tpu.memory_space<smem>>) -> (i32, i32, i32) {
    %c0_i32 = arith.constant 0 : i32
    %c0_i32_0 = arith.constant 0 : i32
    %c0_i32_1 = arith.constant 0 : i32
    return %arg0, %c0_i32, %c0_i32_0 : i32, i32, i32
  }
}

</mosaic_0001>

<llo_original>
// kernel: tpu_custom_call.1
$region0: #{tpu_custom_call.1}
  #allocation0 [shape = 'u32[]', space=smem, size = 0x4, offset = 0x4, fixed_abs, tag = 'smem constant byte address 0x4 - core index']
  #allocation1 [shape = 'u32[144,128]{1,0:T(1,128)}', space=vmem, size = 0x12000, scoped, tag = 'internal scratch']
  #allocation2 [shape = 's32[1]{0}', space=sflag, size = 0x4, scoped, tag = 'scoped memory for tpu_custom_call.1']
  #allocation3 [shape = 'u8[2048]{0}', space=smem, size = 0x800, scoped, tag = 'prefetched SMEM operand 0']
  %s0 = inlined_call_operand.hbm [shape: s32[4,4], index: 0, kind: input, shape index: {}]
  %s1 = inlined_call_operand.hbm [shape: s32[4,1,256], index: 1, kind: input, shape index: {}]
  %s2 = inlined_call_operand.vmem [shape: f32[4,1,1], index: 2, kind: output, shape index: {}]
  %s3 = sld [smem:[#allocation0]]
  $region41: #{tpu_custom_call.1} parent=0
    _
  %s5 = ssub.s32 1, %s3
  %s6 = scalar_select 0, %s5, %s3
  %8 = dma.hbm_to_smem %s0, 64, [#allocation3], [#allocation2]
  %9 = dma.done [#allocation2], 64
  %10 = sfence
  $region1: #{tpu_custom_call.1} parent=0
    #allocation4 [shape = 'u8[2048]{0}', space=vmem, size = 0x800, scoped, tag = 'input window, operand 1']
    #allocation5 [shape = 's32[2]{0}', space=sflag, size = 0x8, scoped, tag = 'scoped memory for tpu_custom_call.1']
    %11 = vsyncpa [#allocation5], 0
    %s12 = scalar_lea.sflag [#allocation5], 1
    %13 = vsyncpa %s12, 0
    loop: start=0, step=1, limit=6
    $region2: #{tpu_custom_call.1} parent=1 // loop_pre_header
      _
    $region3: #{tpu_custom_call.1} parent=1 // loop_header
      %s15 = sphi 0, %s19
      %p16 = scmp.ge.s32.totalorder %s15, 6
      %s25 = sphi 0, %s27
      %s28 = sphi 0, %s25
      %s29 = sphi 0, %s28
      %s45 = sphi 0, %s29
      %s51 = sphi 0, %s53
      %s54 = sphi 0, %s51
      %s55 = sphi 0, %s54
      %s71 = sphi 0, %s55
    $region4: #{tpu_custom_call.1} parent=1 // loop_header_branch
      %18 = sbr.rel (%p16) target = $region8
    $region5: #{tpu_custom_call.1} parent=1 // loop_body
      %s20 = ssub.s32 %s15, 1
      %s21 = ssub.s32 %s15, 2
      %s22 = sadd.s32 %s15, 1
      %s23 = ssub.s32 %s15, %s22
      %p24 = scmp.eq.s32.totalorder %s23, 0
      %s26 = sadd.s32 %s25, 1
      %s27 = scalar_select %p24, %s25, %s26
      %p30 = pneg %p24
      %p31 = scmp.eq.s32.totalorder %s15, 3
      %p32 = por %p30, %p31
      %p33 = scmp.ne.s32.totalorder %s25, %s28
      %p34 = scmp.eq.s32.totalorder %s15, 0
      %p35 = por %p33, %p34
      %p36 = scmp.ne.s32.totalorder %s25, %s28
      %p37 = scmp.eq.s32.totalorder %s20, 3
      %p38 = por %p36, %p37
      %p39 = scmp.ne.s32.totalorder %s28, %s29
      %p40 = scmp.eq.s32.totalorder %s20, 0
      %p41 = por %p39, %p40
      %p42 = scmp.ne.s32.totalorder %s28, %s29
      %p43 = scmp.eq.s32.totalorder %s21, 3
      %p44 = por %p42, %p43
      %p46 = scmp.ne.s32.totalorder %s29, %s45
      %p47 = scmp.eq.s32.totalorder %s21, 0
      %p48 = por %p46, %p47
      %s49 = ssub.s32 %s15, %s22
      %p50 = scmp.eq.s32.totalorder %s49, 0
      %s52 = sadd.s32 %s51, 1
      %s53 = scalar_select %p50, %s51, %s52
      %p56 = pneg %p50
      %p57 = scmp.eq.s32.totalorder %s15, 3
      %p58 = por %p56, %p57
      %p59 = scmp.ne.s32.totalorder %s51, %s54
      %p60 = scmp.eq.s32.totalorder %s15, 0
      %p61 = por %p59, %p60
      %p62 = scmp.ne.s32.totalorder %s51, %s54
      %p63 = scmp.eq.s32.totalorder %s20, 3
      %p64 = por %p62, %p63
      %p65 = scmp.ne.s32.totalorder %s54, %s55
      %p66 = scmp.eq.s32.totalorder %s20, 0
      %p67 = por %p65, %p66
      %p68 = scmp.ne.s32.totalorder %s54, %s55
      %p69 = scmp.eq.s32.totalorder %s21, 3
      %p70 = por %p68, %p69
      %p72 = scmp.ne.s32.totalorder %s55, %s71
      %p73 = scmp.eq.s32.totalorder %s21, 0
      %p74 = por %p72, %p73
      %p75 = scmp.le.s32.totalorder 1, %s15
      %p76 = scmp.lt.s32.totalorder %s15, 5
      %p77 = pnand %p75, %p76
      %p78 = pneg %p77
      // Predicated region
      $region9: #{tpu_custom_call.1} parent=5 // pred_check
        _
      $region10: #{tpu_custom_call.1} parent=5 // pred_check_branch
        %80 = sbr.rel (%p77) target = $region12
      $region11: #{tpu_custom_call.1} parent=5 // pred_region
        %s81 = ssub.s32 %s15, 1
      $region12: #{tpu_custom_call.1} parent=5 // pred_fallthru
        _
      %p82 = scmp.lt.s32.totalorder %s15, 4
      // Predicated region
      $region13: #{tpu_custom_call.1} parent=5 // pred_check
        %p83 = pneg %p82
      $region14: #{tpu_custom_call.1} parent=5 // pred_check_branch
        %85 = sbr.rel (%p83) target = $region16
      $region15: #{tpu_custom_call.1} parent=5 // pred_region
        // Predicated region
        $region17: #{tpu_custom_call.1} parent=15 // pred_check
          %p86 = pneg %p35
        $region18: #{tpu_custom_call.1} parent=15 // pred_check_branch
          %88 = sbr.rel (%p86) target = $region20
        $region19: #{tpu_custom_call.1} parent=15 // pred_region
          %s89 = sand.u32 %s25, 1
          %s90 = scalar_lea.sflag [#allocation5], %s89
          %s91 = sand.u32 %s25, 1
          %s92 = smul.addr %s91, 2
          %s93 = scalar_lea.vmem [#allocation4], %s92
          %s95 = ssub.s32 32, 32
          %96 = vsyncadd %s90, %s95
          %s97 = smul.addr %s15, 2
          %s98 = smul.addr %s97, 16
          %s99 = scalar_lea.hbm %s1, %s98
          %s101 = sshll.u32 %s93, 4
          %s102 = int_to_ptr.vmem [resolvable:$true] %s101
          %104 = dma.hbm_to_vmem [thread:$0]  %s99, 32, %s102, %s90
        $region20: #{tpu_custom_call.1} parent=15 // pred_fallthru
          _
      $region16: #{tpu_custom_call.1} parent=5 // pred_fallthru
        _
      %p105 = scmp.le.s32.totalorder 1, %s15
      %p106 = scmp.lt.s32.totalorder %s15, 5
      %p107 = pnand %p105, %p106
      %p108 = pneg %p107
      // Predicated region
      $region21: #{tpu_custom_call.1} parent=5 // pred_check
        _
      $region22: #{tpu_custom_call.1} parent=5 // pred_check_branch
        %110 = sbr.rel (%p107) target = $region24
      $region23: #{tpu_custom_call.1} parent=5 // pred_region
        %s111 = ssub.s32 %s15, 1
        %s112 = sand.u32 %s28, 1
        %s113 = scalar_lea.sflag [#allocation5], %s112
        %s114 = sand.u32 %s28, 1
        %s115 = smul.addr %s114, 2
        %s116 = scalar_lea.vmem [#allocation4], %s115
        // Predicated region
        $region25: #{tpu_custom_call.1} parent=23 // pred_check
          %p117 = pneg %p41
        $region26: #{tpu_custom_call.1} parent=23 // pred_check_branch
          %119 = sbr.rel (%p117) target = $region28
        $region27: #{tpu_custom_call.1} parent=23 // pred_region
          %120 = dma.done %s113, 32
        $region28: #{tpu_custom_call.1} parent=23 // pred_fallthru
          _
        %s121 = sand.u32 %s28, 1
        %s122 = scalar_lea.sflag [#allocation5], %s121
        %s123 = sand.u32 %s28, 1
        %s124 = smul.addr %s123, 2
        %s125 = scalar_lea.vmem [#allocation4], %s124
        %p126 = pneg %p41
        %p127 = pneg %p38
        %p128 = pneg %p67
        %p129 = pneg %p64
        %p130 = scmp.lt.s32.totalorder %s20, 3
        %s131 = scalar_select %p130, %s20, 3
        %s132 = scalar_lea.vmem %s2, %s131
        %p133 = scmp.lt.s32.totalorder %s20, 3
        %s134 = scalar_select %p133, %s20, 3
        %s135 = scalar_lea.vmem %s2, %s134
        %s136 = sld [smem:[#allocation3 + %s20]]
        %s137 = sshra.s32 %s20, 7
        %s138 = sand.u32 %s20, 127
        %s139 = sadd.s32 %s137, 1
        %s140 = smul.u32 %s139, 128
        %s141 = sshra.s32 %s20, 7
        %s142 = sand.u32 %s20, 127
        %s143 = sadd.s32 %s140, %s142
        %s144 = sld [smem:[#allocation3 + %s143]]
        %s145 = sadd.s32 %s137, 2
        %s146 = smul.u32 %s145, 128
        %s147 = sadd.s32 %s146, %s142
        %s148 = sld [smem:[#allocation3 + %s147]]
        %s149 = sadd.s32 %s137, 3
        %s150 = smul.u32 %s149, 128
        %s151 = sadd.s32 %s150, %s142
        %s152 = sld [smem:[#allocation3 + %s151]]
        %p153 = scmp.eq.s32.totalorder %s148, %s152
        %v154 = vld [vmem:[%s116] sm:$0x3]
        %v155 = vlaneseq
        %v156 = vand.u32 %v155, 127
        %v157 = vadd.s32 %v156, 128
        %vm158 = vcmp.eq.s32.totalorder %v154, 105
        %v159 = vstv %s136
        %vm160 = vcmp.gt.s32.totalorder %v156, %v159
        %vm161 = vcmp.gt.s32.totalorder %v157, %v159
        %v162 = vsel %vm160, 1, 0
        %v163 = vsel %vm161, 1, 0
        %v164 = vcombine.low %v162, %v163
        %v166 = vunpack.c.l.s4 1966171168
        %v167 = vunpack.c.0.s8 %v166
        %v168 = vlaneseq
        %v169 = vshrl.u32 %v168, 7
        %v170 = vsub.s32 %v167, %v169
        %v171 = vrot.slane %v164, %v170
        %v173 = vunpack.c.l.s4 1966171168
        %v174 = vunpack.c.0.s8 %v173
        %v175 = vlaneseq
        %v176 = vshrl.u32 %v175, 7
        %v177 = vsub.s32 %v174, %v176
        %v178 = vrot.slane %v171, %v177
        %vm179 = vcmp.ne.s32.totalorder %v178, 0
        %vm180 = vmand %vm158, %vm179
        %v181 = vcombine.low %v156, %v157
        %v183 = vunpack.c.l.s4 1966171168
        %v184 = vunpack.c.0.s8 %v183
        %v185 = vlaneseq
        %v186 = vshrl.u32 %v185, 7
        %v187 = vsub.s32 %v184, %v186
        %v188 = vrot.slane %v181, %v187
        %v190 = vunpack.c.l.s4 1966171168
        %v191 = vunpack.c.0.s8 %v190
        %v192 = vlaneseq
        %v193 = vshrl.u32 %v192, 7
        %v194 = vsub.s32 %v191, %v193
        %v195 = vrot.slane %v188, %v194
        %v196 = vsel %vm180, %v195, 256
        %v197 = vlaneseq
        %v198 = vshrl.u32 %v197, 7
        %v199 = vsub.s32 0, %v198
        %v200 = vrot.slane %v196, %v199
        %v201 = vlaneseq
        %v202 = vshrl.u32 %v201, 7
        %v203 = vsub.s32 1, %v202
        %v204 = vrot.slane %v196, %v203
        %vm205 = vcmask 1040384
        %v206 = vsel %vm205, %v200, 2147483647
        %v207 = vsel %vm205, %v204, 2147483647
        %vm208 = vcmp.lt.s32.totalorder %v206, %v207
        %v209 = vsel %vm208, %v206, %v207
        %v210 = vand.u32 %v209, 65535
        %v211 = vshra.s32 %v209, 16
        %v212 = vcvt.s32.f32 %v210
        %v213 = vcvt.s32.f32 %v211
        %214 = vmin.xlane.f32.xlu0 %v213
        %v215 = vpop.xlane.xlu0 %214
        %vm216 = vcmp.eq.f32.partialorder %v213, %v215
        %v217 = vsel %vm216, %v212, inf
        %218 = vmin.xlane.f32.xlu0 %v217
        %v219 = vpop.xlane.xlu0 %218
        %v220 = vcvt.f32.s32 %v219
        %v221 = vcvt.f32.s32 %v215
        %v222 = vshll.u32 %v221, 16
        %v223 = vadd.s32 %v222, %v220
        %v224 = vstv %s144
        %vm225 = vcmp.gt.s32.totalorder %v156, %v224
        %vm226 = vcmp.gt.s32.totalorder %v157, %v224
        %v227 = vsel %vm225, 1, 0
        %v228 = vsel %vm226, 1, 0
        %v229 = vcombine.low %v227, %v228
        %v231 = vunpack.c.l.s4 1966171168
        %v232 = vunpack.c.0.s8 %v231
        %v233 = vlaneseq
        %v234 = vshrl.u32 %v233, 7
        %v235 = vsub.s32 %v232, %v234
        %v236 = vrot.slane %v229, %v235
        %v238 = vunpack.c.l.s4 1966171168
        %v239 = vunpack.c.0.s8 %v238
        %v240 = vlaneseq
        %v241 = vshrl.u32 %v240, 7
        %v242 = vsub.s32 %v239, %v241
        %v243 = vrot.slane %v236, %v242
        %vm244 = vcmp.ne.s32.totalorder %v243, 0
        %vm245 = vmand %vm158, %vm244
        %v246 = vsel %vm245, %v195, 256
        %v247 = vlaneseq
        %v248 = vshrl.u32 %v247, 7
        %v249 = vsub.s32 0, %v248
        %v250 = vrot.slane %v246, %v249
        %v251 = vlaneseq
        %v252 = vshrl.u32 %v251, 7
        %v253 = vsub.s32 1, %v252
        %v254 = vrot.slane %v246, %v253
        %v255 = vsel %vm205, %v250, 2147483647
        %v256 = vsel %vm205, %v254, 2147483647
        %vm257 = vcmp.lt.s32.totalorder %v255, %v256
        %v258 = vsel %vm257, %v255, %v256
        %v259 = vand.u32 %v258, 65535
        %v260 = vshra.s32 %v258, 16
        %v261 = vcvt.s32.f32 %v259
        %v262 = vcvt.s32.f32 %v260
        %263 = vmin.xlane.f32.xlu0 %v262
        %v264 = vpop.xlane.xlu0 %263
        %vm265 = vcmp.eq.f32.partialorder %v262, %v264
        %v266 = vsel %vm265, %v261, inf
        %267 = vmin.xlane.f32.xlu0 %v266
        %v268 = vpop.xlane.xlu0 %267
        %v269 = vcvt.f32.s32 %v268
        %v270 = vcvt.f32.s32 %v264
        %v271 = vshll.u32 %v270, 16
        %v272 = vadd.s32 %v271, %v269
        %vm273 = vcmp.lt.s32.totalorder %v156, %v223
        %vm274 = vcmp.lt.s32.totalorder %v157, %v223
        %vm275 = vmand %vm160, %vm273
        %vm276 = vmand %vm161, %vm274
        %vm277 = vcmp.lt.s32.totalorder %v156, %v272
        %vm278 = vcmp.lt.s32.totalorder %v157, %v272
        %vm279 = vmand %vm225, %vm277
        %vm280 = vmand %vm226, %vm278
        %v281 = vlaneseq
        %v282 = vshrl.u32 %v281, 7
        %v283 = vadd.s32 %v282, 8
        %v284 = vadd.s32 %v282, 16
        %v285 = vadd.s32 %v282, 24
        %v286 = vadd.s32 %v282, 32
        %v287 = vadd.s32 %v282, 40
        %v288 = vadd.s32 %v282, 48
        %v289 = vadd.s32 %v282, 56
        %s290 = sadd.s32 %s136, 1
        %v291 = vstv %s290
        %v292 = vadd.s32 %v291, %v282
        %v293 = vadd.s32 %v291, %v283
        %v294 = vadd.s32 %v291, %v284
        %v295 = vadd.s32 %v291, %v285
        %v296 = vadd.s32 %v291, %v286
        %v297 = vadd.s32 %v291, %v287
        %v298 = vadd.s32 %v291, %v288
        %v299 = vadd.s32 %v291, %v289
        %vm300 = vcmp.eq.s32.totalorder %v156, %v292
        %vm301 = vcmp.eq.s32.totalorder %v157, %v292
        %vm302 = vcmp.eq.s32.totalorder %v156, %v293
        %vm303 = vcmp.eq.s32.totalorder %v157, %v293
        %vm304 = vcmp.eq.s32.totalorder %v156, %v294
        %vm305 = vcmp.eq.s32.totalorder %v157, %v294
        %vm306 = vcmp.eq.s32.totalorder %v156, %v295
        %vm307 = vcmp.eq.s32.totalorder %v157, %v295
        %vm308 = vcmp.eq.s32.totalorder %v156, %v296
        %vm309 = vcmp.eq.s32.totalorder %v157, %v296
        %vm310 = vcmp.eq.s32.totalorder %v156, %v297
        %vm311 = vcmp.eq.s32.totalorder %v157, %v297
        %vm312 = vcmp.eq.s32.totalorder %v156, %v298
        %vm313 = vcmp.eq.s32.totalorder %v157, %v298
        %vm314 = vcmp.eq.s32.totalorder %v156, %v299
        %vm315 = vcmp.eq.s32.totalorder %v157, %v299
        %v316 = vlaneseq
        %v317 = vshrl.u32 %v316, 7
        %v318 = vsub.s32 0, %v317
        %v319 = vrot.slane %v154, %v318
        %v320 = vlaneseq
        %v321 = vshrl.u32 %v320, 7
        %v322 = vsub.s32 1, %v321
        %v323 = vrot.slane %v154, %v322
        %v324 = vsel %vm300, %v319, 0
        %v325 = vsel %vm301, %v323, 0
        %v326 = vsel %vm302, %v319, 0
        %v327 = vsel %vm303, %v323, 0
        %v328 = vsel %vm304, %v319, 0
        %v329 = vsel %vm305, %v323, 0
        %v330 = vsel %vm306, %v319, 0
        %v331 = vsel %vm307, %v323, 0
        %v332 = vsel %vm308, %v319, 0
        %v333 = vsel %vm309, %v323, 0
        %v334 = vsel %vm310, %v319, 0
        %v335 = vsel %vm311, %v323, 0
        %v336 = vsel %vm312, %v319, 0
        %v337 = vsel %vm313, %v323, 0
        %v338 = vsel %vm314, %v319, 0
        %v339 = vsel %vm315, %v323, 0
        %v340 = vadd.s32 %v324, %v325
        %v341 = vand.u32 %v340, 65535
        %v342 = vshrl.u32 %v340, 16
        %v343 = vcvt.s32.f32 %v341
        %v344 = vcvt.s32.f32 %v342
        %345 = vadd.xlane.f32.xlu0 %v343
        %v346 = vpop.xlane.xlu0 %345
        %347 = vadd.xlane.f32.xlu0 %v344
        %v348 = vpop.xlane.xlu0 %347
        %v349 = vcvt.f32.s32 %v346
        %v350 = vcvt.f32.s32 %v348
        %v351 = vshll.u32 %v350, 16
        %v352 = vadd.s32 %v351, %v349
        %v353 = vadd.s32 %v326, %v327
        %v354 = vand.u32 %v353, 65535
        %v355 = vshrl.u32 %v353, 16
        %v356 = vcvt.s32.f32 %v354
        %v357 = vcvt.s32.f32 %v355
        %358 = vadd.xlane.f32.xlu0 %v356
        %v359 = vpop.xlane.xlu0 %358
        %360 = vadd.xlane.f32.xlu0 %v357
        %v361 = vpop.xlane.xlu0 %360
        %v362 = vcvt.f32.s32 %v359
        %v363 = vcvt.f32.s32 %v361
        %v364 = vshll.u32 %v363, 16
        %v365 = vadd.s32 %v364, %v362
        %v366 = vadd.s32 %v328, %v329
        %v367 = vand.u32 %v366, 65535
        %v368 = vshrl.u32 %v366, 16
        %v369 = vcvt.s32.f32 %v367
        %v370 = vcvt.s32.f32 %v368
        %371 = vadd.xlane.f32.xlu0 %v369
        %v372 = vpop.xlane.xlu0 %371
        %373 = vadd.xlane.f32.xlu0 %v370
        %v374 = vpop.xlane.xlu0 %373
        %v375 = vcvt.f32.s32 %v372
        %v376 = vcvt.f32.s32 %v374
        %v377 = vshll.u32 %v376, 16
        %v378 = vadd.s32 %v377, %v375
        %v379 = vadd.s32 %v330, %v331
        %v380 = vand.u32 %v379, 65535
        %v381 = vshrl.u32 %v379, 16
        %v382 = vcvt.s32.f32 %v380
        %v383 = vcvt.s32.f32 %v381
        %384 = vadd.xlane.f32.xlu0 %v382
        %v385 = vpop.xlane.xlu0 %384
        %386 = vadd.xlane.f32.xlu0 %v383
        %v387 = vpop.xlane.xlu0 %386
        %v388 = vcvt.f32.s32 %v385
        %v389 = vcvt.f32.s32 %v387
        %v390 = vshll.u32 %v389, 16
        %v391 = vadd.s32 %v390, %v388
        %v392 = vadd.s32 %v332, %v333
        %v393 = vand.u32 %v392, 65535
        %v394 = vshrl.u32 %v392, 16
        %v395 = vcvt.s32.f32 %v393
        %v396 = vcvt.s32.f32 %v394
        %397 = vadd.xlane.f32.xlu0 %v395
        %v398 = vpop.xlane.xlu0 %397
        %399 = vadd.xlane.f32.xlu0 %v396
        %v400 = vpop.xlane.xlu0 %399
        %v401 = vcvt.f32.s32 %v398
        %v402 = vcvt.f32.s32 %v400
        %v403 = vshll.u32 %v402, 16
        %v404 = vadd.s32 %v403, %v401
        %v405 = vadd.s32 %v334, %v335
        %v406 = vand.u32 %v405, 65535
        %v407 = vshrl.u32 %v405, 16
        %v408 = vcvt.s32.f32 %v406
        %v409 = vcvt.s32.f32 %v407
        %410 = vadd.xlane.f32.xlu0 %v408
        %v411 = vpop.xlane.xlu0 %410
        %412 = vadd.xlane.f32.xlu0 %v409
        %v413 = vpop.xlane.xlu0 %412
        %v414 = vcvt.f32.s32 %v411
        %v415 = vcvt.f32.s32 %v413
        %v416 = vshll.u32 %v415, 16
        %v417 = vadd.s32 %v416, %v414
        %v418 = vadd.s32 %v336, %v337
        %v419 = vand.u32 %v418, 65535
        %v420 = vshrl.u32 %v418, 16
        %v421 = vcvt.s32.f32 %v419
        %v422 = vcvt.s32.f32 %v420
        %423 = vadd.xlane.f32.xlu0 %v421
        %v424 = vpop.xlane.xlu0 %423
        %425 = vadd.xlane.f32.xlu0 %v422
        %v426 = vpop.xlane.xlu0 %425
        %v427 = vcvt.f32.s32 %v424
        %v428 = vcvt.f32.s32 %v426
        %v429 = vshll.u32 %v428, 16
        %v430 = vadd.s32 %v429, %v427
        %v431 = vadd.s32 %v338, %v339
        %v432 = vand.u32 %v431, 65535
        %v433 = vshrl.u32 %v431, 16
        %v434 = vcvt.s32.f32 %v432
        %v435 = vcvt.s32.f32 %v433
        %436 = vadd.xlane.f32.xlu0 %v434
        %v437 = vpop.xlane.xlu0 %436
        %438 = vadd.xlane.f32.xlu0 %v435
        %v439 = vpop.xlane.xlu0 %438
        %v440 = vcvt.f32.s32 %v437
        %v441 = vcvt.f32.s32 %v439
        %v442 = vshll.u32 %v441, 16
        %v443 = vadd.s32 %v442, %v440
        %v444 = vsel %vm275, 1, 0
        %v445 = vsel %vm276, 1, 0
        %v446 = vlaneseq
        %v447 = vshrl.u32 %v446, 7
        %v448 = vsub.s32 0, %v447
        %v449 = vrot.slane %v444, %v448
        %v450 = vlaneseq
        %v451 = vshrl.u32 %v450, 7
        %v452 = vsub.s32 0, %v451
        %v453 = vrot.slane %v445, %v452
        %vm454 = vcmp.eq.s32.totalorder %v449, 1
        %vm455 = vcmp.eq.s32.totalorder %v453, 1
        %vm456 = vmand %vm300, %vm454
        %vm457 = vmand %vm301, %vm455
        %vm458 = vmand %vm302, %vm454
        %vm459 = vmand %vm303, %vm455
        %vm460 = vmand %vm304, %vm454
        %vm461 = vmand %vm305, %vm455
        %vm462 = vmand %vm306, %vm454
        %vm463 = vmand %vm307, %vm455
        %vm464 = vmand %vm308, %vm454
        %vm465 = vmand %vm309, %vm455
        %vm466 = vmand %vm310, %vm454
        %vm467 = vmand %vm311, %vm455
        %vm468 = vmand %vm312, %vm454
        %vm469 = vmand %vm313, %vm455
        %vm470 = vmand %vm314, %vm454
        %vm471 = vmand %vm315, %vm455
        %v472 = vsel %vm456, 1.0, 0.0
        %v473 = vsel %vm457, 1.0, 0.0
        %v474 = vsel %vm458, 1.0, 0.0
        %v475 = vsel %vm459, 1.0, 0.0
        %v476 = vsel %vm460, 1.0, 0.0
        %v477 = vsel %vm461, 1.0, 0.0
        %v478 = vsel %vm462, 1.0, 0.0
        %v479 = vsel %vm463, 1.0, 0.0
        %v480 = vsel %vm464, 1.0, 0.0
        %v481 = vsel %vm465, 1.0, 0.0
        %v482 = vsel %vm466, 1.0, 0.0
        %v483 = vsel %vm467, 1.0, 0.0
        %v484 = vsel %vm468, 1.0, 0.0
        %v485 = vsel %vm469, 1.0, 0.0
        %v486 = vsel %vm470, 1.0, 0.0
        %v487 = vsel %vm471, 1.0, 0.0
        %v488 = vmax.f32 %v472, %v473
        %489 = vmax.xlane.f32.xlu0 %v488
        %v490 = vpop.xlane.xlu0 %489
        %v491 = vmax.f32 %v474, %v475
        %492 = vmax.xlane.f32.xlu0 %v491
        %v493 = vpop.xlane.xlu0 %492
        %v494 = vmax.f32 %v476, %v477
        %495 = vmax.xlane.f32.xlu0 %v494
        %v496 = vpop.xlane.xlu0 %495
        %v497 = vmax.f32 %v478, %v479
        %498 = vmax.xlane.f32.xlu0 %v497
        %v499 = vpop.xlane.xlu0 %498
        %v500 = vmax.f32 %v480, %v481
        %501 = vmax.xlane.f32.xlu0 %v500
        %v502 = vpop.xlane.xlu0 %501
        %v503 = vmax.f32 %v482, %v483
        %504 = vmax.xlane.f32.xlu0 %v503
        %v505 = vpop.xlane.xlu0 %504
        %v506 = vmax.f32 %v484, %v485
        %507 = vmax.xlane.f32.xlu0 %v506
        %v508 = vpop.xlane.xlu0 %507
        %v509 = vmax.f32 %v486, %v487
        %510 = vmax.xlane.f32.xlu0 %v509
        %v511 = vpop.xlane.xlu0 %510
        %vm512 = vcmp.gt.f32.partialorder %v490, 0.0
        %vm513 = vcmp.gt.f32.partialorder %v493, 0.0
        %vm514 = vcmp.gt.f32.partialorder %v496, 0.0
        %vm515 = vcmp.gt.f32.partialorder %v499, 0.0
        %vm516 = vcmp.gt.f32.partialorder %v502, 0.0
        %vm517 = vcmp.gt.f32.partialorder %v505, 0.0
        %vm518 = vcmp.gt.f32.partialorder %v508, 0.0
        %vm519 = vcmp.gt.f32.partialorder %v511, 0.0
        %vm520 = vcmp.eq.s32.totalorder %v352, %v319
        %vm521 = vcmp.eq.s32.totalorder %v352, %v323
        %vm522 = vcmp.eq.s32.totalorder %v365, %v319
        %vm523 = vcmp.eq.s32.totalorder %v365, %v323
        %vm524 = vcmp.eq.s32.totalorder %v378, %v319
        %vm525 = vcmp.eq.s32.totalorder %v378, %v323
        %vm526 = vcmp.eq.s32.totalorder %v391, %v319
        %vm527 = vcmp.eq.s32.totalorder %v391, %v323
        %vm528 = vcmp.eq.s32.totalorder %v404, %v319
        %vm529 = vcmp.eq.s32.totalorder %v404, %v323
        %vm530 = vcmp.eq.s32.totalorder %v417, %v319
        %vm531 = vcmp.eq.s32.totalorder %v417, %v323
        %vm532 = vcmp.eq.s32.totalorder %v430, %v319
        %vm533 = vcmp.eq.s32.totalorder %v430, %v323
        %vm534 = vcmp.eq.s32.totalorder %v443, %v319
        %vm535 = vcmp.eq.s32.totalorder %v443, %v323
        %v536 = vsel %vm512, 1, 0
        %v537 = vsel %vm513, 1, 0
        %v538 = vsel %vm514, 1, 0
        %v539 = vsel %vm515, 1, 0
        %v540 = vsel %vm516, 1, 0
        %v541 = vsel %vm517, 1, 0
        %v542 = vsel %vm518, 1, 0
        %v543 = vsel %vm519, 1, 0
        %vm544 = vcmp.eq.s32.totalorder %v536, 1
        %vm545 = vcmp.eq.s32.totalorder %v537, 1
        %vm546 = vcmp.eq.s32.totalorder %v538, 1
        %vm547 = vcmp.eq.s32.totalorder %v539, 1
        %vm548 = vcmp.eq.s32.totalorder %v540, 1
        %vm549 = vcmp.eq.s32.totalorder %v541, 1
        %vm550 = vcmp.eq.s32.totalorder %v542, 1
        %vm551 = vcmp.eq.s32.totalorder %v543, 1
        %vm552 = vmand %vm520, %vm544
        %vm553 = vmand %vm521, %vm544
        %vm554 = vmand %vm522, %vm545
        %vm555 = vmand %vm523, %vm545
        %vm556 = vmand %vm524, %vm546
        %vm557 = vmand %vm525, %vm546
        %vm558 = vmand %vm526, %vm547
        %vm559 = vmand %vm527, %vm547
        %vm560 = vmand %vm528, %vm548
        %vm561 = vmand %vm529, %vm548
        %vm562 = vmand %vm530, %vm549
        %vm563 = vmand %vm531, %vm549
        %vm564 = vmand %vm532, %vm550
        %vm565 = vmand %vm533, %vm550
        %vm566 = vmand %vm534, %vm551
        %vm567 = vmand %vm535, %vm551
        %v568 = vsel %vm279, 1, 0
        %v569 = vsel %vm280, 1, 0
        %v570 = vlaneseq
        %v571 = vshrl.u32 %v570, 7
        %v572 = vsub.s32 0, %v571
        %v573 = vrot.slane %v568, %v572
        %v574 = vlaneseq
        %v575 = vshrl.u32 %v574, 7
        %v576 = vsub.s32 0, %v575
        %v577 = vrot.slane %v569, %v576
        %vm578 = vcmp.eq.s32.totalorder %v573, 1
        %vm579 = vcmp.eq.s32.totalorder %v577, 1
        %vm580 = vmand %vm552, %vm578
        %vm581 = vmand %vm553, %vm579
        %vm582 = vmand %vm554, %vm578
        %vm583 = vmand %vm555, %vm579
        %vm584 = vmand %vm556, %vm578
        %vm585 = vmand %vm557, %vm579
        %vm586 = vmand %vm558, %vm578
        %vm587 = vmand %vm559, %vm579
        %vm588 = vmand %vm560, %vm578
        %vm589 = vmand %vm561, %vm579
        %vm590 = vmand %vm562, %vm578
        %vm591 = vmand %vm563, %vm579
        %vm592 = vmand %vm564, %vm578
        %vm593 = vmand %vm565, %vm579
        %vm594 = vmand %vm566, %vm578
        %vm595 = vmand %vm567, %vm579
        %v596 = vsel %vm580, 1.0, 0.0
        %v597 = vsel %vm581, 1.0, 0.0
        %v598 = vsel %vm582, 1.0, 0.0
        %v599 = vsel %vm583, 1.0, 0.0
        %v600 = vsel %vm584, 1.0, 0.0
        %v601 = vsel %vm585, 1.0, 0.0
        %v602 = vsel %vm586, 1.0, 0.0
        %v603 = vsel %vm587, 1.0, 0.0
        %v604 = vsel %vm588, 1.0, 0.0
        %v605 = vsel %vm589, 1.0, 0.0
        %v606 = vsel %vm590, 1.0, 0.0
        %v607 = vsel %vm591, 1.0, 0.0
        %v608 = vsel %vm592, 1.0, 0.0
        %v609 = vsel %vm593, 1.0, 0.0
        %v610 = vsel %vm594, 1.0, 0.0
        %v611 = vsel %vm595, 1.0, 0.0
        %v612 = vmax.f32 %v596, %v597
        %613 = vmax.xlane.f32.xlu0 %v612
        %v614 = vpop.xlane.xlu0 %613
        %v615 = vmax.f32 %v598, %v599
        %616 = vmax.xlane.f32.xlu0 %v615
        %v617 = vpop.xlane.xlu0 %616
        %v618 = vmax.f32 %v600, %v601
        %619 = vmax.xlane.f32.xlu0 %v618
        %v620 = vpop.xlane.xlu0 %619
        %v621 = vmax.f32 %v602, %v603
        %622 = vmax.xlane.f32.xlu0 %v621
        %v623 = vpop.xlane.xlu0 %622
        %v624 = vmax.f32 %v604, %v605
        %625 = vmax.xlane.f32.xlu0 %v624
        %v626 = vpop.xlane.xlu0 %625
        %v627 = vmax.f32 %v606, %v607
        %628 = vmax.xlane.f32.xlu0 %v627
        %v629 = vpop.xlane.xlu0 %628
        %v630 = vmax.f32 %v608, %v609
        %631 = vmax.xlane.f32.xlu0 %v630
        %v632 = vpop.xlane.xlu0 %631
        %v633 = vmax.f32 %v610, %v611
        %634 = vmax.xlane.f32.xlu0 %v633
        %v635 = vpop.xlane.xlu0 %634
        %vm636 = vcmp.gt.f32.partialorder %v614, 0.0
        %vm637 = vcmp.gt.f32.partialorder %v617, 0.0
        %vm638 = vcmp.gt.f32.partialorder %v620, 0.0
        %vm639 = vcmp.gt.f32.partialorder %v623, 0.0
        %vm640 = vcmp.gt.f32.partialorder %v626, 0.0
        %vm641 = vcmp.gt.f32.partialorder %v629, 0.0
        %vm642 = vcmp.gt.f32.partialorder %v632, 0.0
        %vm643 = vcmp.gt.f32.partialorder %v635, 0.0
        %v644 = vmax.f32 %v596, %v600
        %v645 = vmax.f32 %v598, %v602
        %v646 = vmax.f32 %v644, %v604
        %v647 = vmax.f32 %v645, %v606
        %v648 = vmax.f32 %v646, %v608
        %v649 = vmax.f32 %v647, %v610
        %v650 = vmax.f32 %v648, %v649
        %v651 = vrot.slane %v650, 4
        %v652 = vmax.f32 %v650, %v651
        %v653 = vrot.slane %v652, 2
        %v654 = vmax.f32 %v652, %v653
        %v655 = vrot.slane %v654, 1
        %v656 = vmax.f32 %v654, %v655
        %v657 = vmax.f32 %v597, %v601
        %v658 = vmax.f32 %v599, %v603
        %v659 = vmax.f32 %v657, %v605
        %v660 = vmax.f32 %v658, %v607
        %v661 = vmax.f32 %v659, %v609
        %v662 = vmax.f32 %v660, %v611
        %v663 = vmax.f32 %v661, %v662
        %v664 = vrot.slane %v663, 4
        %v665 = vmax.f32 %v663, %v664
        %v666 = vrot.slane %v665, 2
        %v667 = vmax.f32 %v665, %v666
        %v668 = vrot.slane %v667, 1
        %v669 = vmax.f32 %v667, %v668
        %vm670 = vcmp.gt.f32.partialorder %v656, 0.0
        %vm671 = vcmp.gt.f32.partialorder %v669, 0.0
        %v672 = vsel %vm636, 1, 0
        %v673 = vsel %vm637, 1, 0
        %v674 = vsel %vm638, 1, 0
        %v675 = vsel %vm639, 1, 0
        %v676 = vsel %vm640, 1, 0
        %v677 = vsel %vm641, 1, 0
        %v678 = vsel %vm642, 1, 0
        %v679 = vsel %vm643, 1, 0
        %v680 = vadd.s32 %v672, %v676
        %v681 = vadd.s32 %v673, %v677
        %v682 = vadd.s32 %v674, %v678
        %v683 = vadd.s32 %v675, %v679
        %v684 = vadd.s32 %v680, %v681
        %v685 = vadd.s32 %v682, %v683
        %v686 = vadd.s32 %v684, %v685
        %v687 = vrot.slane %v686, 4
        %v688 = vadd.s32 %v686, %v687
        %v689 = vrot.slane %v688, 2
        %v690 = vadd.s32 %v688, %v689
        %v691 = vrot.slane %v690, 1
        %v692 = vadd.s32 %v690, %v691
        %v693 = vsel %vm670, 1, 0
        %v694 = vsel %vm671, 1, 0
        %v695 = vadd.s32 %v693, %v694
        %v696 = vand.u32 %v695, 65535
        %v697 = vshrl.u32 %v695, 16
        %v698 = vcvt.s32.f32 %v696
        %v699 = vcvt.s32.f32 %v697
        %700 = vadd.xlane.f32.xlu0 %v698
        %v701 = vpop.xlane.xlu0 %700
        %702 = vadd.xlane.f32.xlu0 %v699
        %v703 = vpop.xlane.xlu0 %702
        %v704 = vcvt.f32.s32 %v701
        %v705 = vcvt.f32.s32 %v703
        %v706 = vshll.u32 %v705, 16
        %v707 = vadd.s32 %v706, %v704
        %v708 = vadd.s32 %v536, %v540
        %v709 = vadd.s32 %v537, %v541
        %v710 = vadd.s32 %v538, %v542
        %v711 = vadd.s32 %v539, %v543
        %v712 = vadd.s32 %v708, %v709
        %v713 = vadd.s32 %v710, %v711
        %v714 = vadd.s32 %v712, %v713
        %v715 = vrot.slane %v714, 4
        %v716 = vadd.s32 %v714, %v715
        %v717 = vrot.slane %v716, 2
        %v718 = vadd.s32 %v716, %v717
        %v719 = vrot.slane %v718, 1
        %v720 = vadd.s32 %v718, %v719
        %v721 = vsel %vm205, %v568, 0
        %v722 = vsel %vm205, %v569, 0
        %v723 = vadd.s32 %v721, %v722
        %v724 = vand.u32 %v723, 65535
        %v725 = vshrl.u32 %v723, 16
        %v726 = vcvt.s32.f32 %v724
        %v727 = vcvt.s32.f32 %v725
        %728 = vadd.xlane.f32.xlu0 %v726
        %v729 = vpop.xlane.xlu0 %728
        %730 = vadd.xlane.f32.xlu0 %v727
        %v731 = vpop.xlane.xlu0 %730
        %v732 = vcvt.f32.s32 %v729
        %v733 = vcvt.f32.s32 %v731
        %v734 = vshll.u32 %v733, 16
        %v735 = vadd.s32 %v734, %v732
        %v736 = vadd.s32 %v692, %v707
        %v737 = vadd.s32 %v720, %v735
        %v738 = vmul.u32 %v736, 5
        %v739 = vmul.u32 %v737, 3
        %vm740 = vcmp.gt.s32.totalorder %v738, %v739
        %s741 = scalar_select %p153, 1, 0
        %v742 = vstv %s741
        %vm743 = vcmp.eq.s32.totalorder %v742, 1
        %vm744 = vmand %vm743, %vm740
        %v745 = vsel %vm744, 1, 0
        %v746 = vcvt.s32.f32 %v745
        %vm747 = vcmask 0
        %748 = vst.msk [vmem:[%s135] sm:$0x1] %vm747, %v746
        %p749 = scmp.lt.s32.totalorder %s20, 3
        %s750 = scalar_select %p749, %s20, 3
        %s751 = scalar_lea.vmem %s2, %s750
        // Predicated region
        $region29: #{tpu_custom_call.1} parent=23 // pred_check
          %p752 = pneg %p64
        $region30: #{tpu_custom_call.1} parent=23 // pred_check_branch
          %754 = sbr.rel (%p752) target = $region32
        $region31: #{tpu_custom_call.1} parent=23 // pred_region
          _
        $region32: #{tpu_custom_call.1} parent=23 // pred_fallthru
          _
      $region24: #{tpu_custom_call.1} parent=5 // pred_fallthru
        _
      %p755 = scmp.le.s32.totalorder 2, %s15
      // Predicated region
      $region33: #{tpu_custom_call.1} parent=5 // pred_check
        %p756 = pneg %p755
      $region34: #{tpu_custom_call.1} parent=5 // pred_check_branch
        %758 = sbr.rel (%p756) target = $region36
      $region35: #{tpu_custom_call.1} parent=5 // pred_region
        %s759 = ssub.s32 %s15, 2
        // Predicated region
        $region37: #{tpu_custom_call.1} parent=35 // pred_check
          %p760 = pneg %p70
        $region38: #{tpu_custom_call.1} parent=35 // pred_check_branch
          %762 = sbr.rel (%p760) target = $region40
        $region39: #{tpu_custom_call.1} parent=35 // pred_region
          %p763 = scmp.lt.s32.totalorder %s21, 3
          %s764 = scalar_select %p763, %s21, 3
          %s765 = scalar_lea.vmem %s2, %s764
        $region40: #{tpu_custom_call.1} parent=35 // pred_fallthru
          _
      $region36: #{tpu_custom_call.1} parent=5 // pred_fallthru
        _
    $region6: #{tpu_custom_call.1} parent=1 // loop_footer
      %s19 = sadd.s32 1, %s15
    $region7: #{tpu_custom_call.1} parent=1 // loop_footer_branch
      %14 = sbr.rel target = $region3
    $region8: #{tpu_custom_call.1} parent=1 // loop_exit
      _
    %766 = vsyncpa [#allocation5], 1
    %s767 = scalar_lea.sflag [#allocation5], 1
    %768 = vsyncpa %s767, 1

</llo_original>
